<compile_context>
chip_gen: v7x
topology: tpu7x:2x2x1
jax: 0.10.0
libtpu: 0.0.40
codegen_flags: <defaults>
</compile_context>

<pallas_src>
import jax
import jax.numpy as jnp
from jax.experimental import pallas as pl
from jax.experimental.pallas import tpu as pltpu

DELTA = 0.01            # HuberLoss delta from the module __init__
LOSS_TUBE = 5.0         # module sets self.loss_tube externally; runtime scalar here
LANES = 128
MAX_TILE_ROWS = 2048    # 2048 x 128 f32 = 1 MiB per input block


def _num_splits():
    # Two TensorCores on v7x benefit from a leading "parallel" split; on
    # single-TC v5e/v6e an extra split only adds rounding waste.
    try:
        kind = jax.devices()[0].device_kind.lower()
        if "v7" in kind:
            return 2
    except Exception:
        pass
    return 1


NUM_SPLITS = _num_splits()


def _sublane_multiple(dtype):
    # f32 -> 8 sublanes, bf16 -> 16, int8/fp8 -> 32 (packed-sublane tiles).
    return 8 * max(1, 4 // jnp.dtype(dtype).itemsize)


def _elem_stats(p, t, thr):
    """Per-element f32 huber / mape / in_tube (shared by kernel and XLA tail)."""
    p = p.astype(jnp.float32)
    t = t.astype(jnp.float32)
    diff = p - t
    absd = jnp.abs(diff)
    # NOTE: a `jnp.minimum(quadratic, linear)` Huber rewrite is NOT equivalent
    # (f - g = 0.5*(|d| - delta)^2 >= 0, so min() always picks the linear
    # branch); keep the compare + select form.
    huber = jnp.where(absd < DELTA, 0.5 * diff * diff, DELTA * (absd - 0.5 * DELTA))
    # Exact f32 divide keeps bit-exact parity of the strict '<' tube count.
    # (EUP approx-reciprocal + Newton would be faster on v7x but is not
    # bit-identical at the tube boundary.)
    mape = absd / jnp.maximum(t, 1e-7)
    in_tube = (mape < thr).astype(jnp.float32)
    return huber, mape, in_tube


def _xla_partial_sums(p, t, thr):
    """Tiny XLA reduction used for the row tail / misaligned-N fallback."""
    huber, mape, in_tube = _elem_stats(p, t, thr)
    return jnp.stack([jnp.sum(huber), jnp.sum(mape), jnp.sum(in_tube)])


def _adaptive_loss_kernel(thr_ref, pred_ref, tgt_ref, out_ref, acc_h, acc_m, acc_c):
    """Accumulates (8,128) per-lane partial sums of [huber, mape, in_tube]."""
    k = pl.program_id(1)

    @pl.when(k == 0)
    def _():
        acc_h[...] = jnp.zeros_like(acc_h)
        acc_m[...] = jnp.zeros_like(acc_m)
        acc_c[...] = jnp.zeros_like(acc_c)

    huber, mape, in_tube = _elem_stats(pred_ref[...], tgt_ref[...], thr_ref[0])

    tile_rows = huber.shape[0]

    def fold(x):
        # Fold along the leading (sublane-group) axis only: whole-vreg VPU
        # adds, no XLU cross-lane reductions in the hot loop.
        return jnp.sum(x.reshape(tile_rows // 8, 8, LANES), axis=0)

    acc_h[...] += fold(huber)
    acc_m[...] += fold(mape)
    acc_c[...] += fold(in_tube)

    @pl.when(k == pl.num_programs(1) - 1)
    def _():
        out_ref[0, 0] = acc_h[...]
        out_ref[0, 1] = acc_m[...]
        out_ref[0, 2] = acc_c[...]


@jax.jit
def adaptive_loss(pred, target, loss_tube):
    n = pred.size
    thr = (0.01 * jnp.asarray(loss_tube, jnp.float32)).reshape(1)
    flat_p = pred.reshape(-1)
    flat_t = target.reshape(-1)

    rows = n // LANES
    rem = n - rows * LANES
    sub = max(_sublane_multiple(pred.dtype), _sublane_multiple(target.dtype))
    tile_rows = min(MAX_TILE_ROWS, (rows // sub) * sub)

    if rem != 0 or tile_rows == 0:
        # N is not a multiple of 128 (or is tiny): any (rows, 128) view would
        # require a full pad/slice copy of BOTH inputs in HBM, which costs
        # more than this single fused XLA pass for a memory-bound reduction.
        # TODO(synk): a manual-DMA kernel over the raw 1-D HBM array could
        # cover this case copy-free as well.
        sums = _xla_partial_sums(flat_p, flat_t, thr[0])
    else:
        splits = NUM_SPLITS
        kt_total = rows // tile_rows            # number of full (tile_rows,128) blocks
        kt = kt_total // splits
        if kt == 0:
            splits, kt = 1, kt_total
        main_rows = splits * kt * tile_rows     # rows covered by the kernel

        p2 = flat_p.reshape(rows, LANES)        # pure bitcast, no copy
        t2 = flat_t.reshape(rows, LANES)

        itemsize = (jnp.dtype(pred.dtype).itemsize
                    + jnp.dtype(target.dtype).itemsize)

        partials = pl.pallas_call(
            _adaptive_loss_kernel,
            out_shape=jax.ShapeDtypeStruct((splits, 3, 8, LANES), jnp.float32),
            grid_spec=pltpu.PrefetchScalarGridSpec(
                num_scalar_prefetch=0,
                grid=(splits, kt),
                in_specs=[
                    pl.BlockSpec(memory_space=pltpu.SMEM),   # 0.01 * loss_tube
                    pl.BlockSpec((tile_rows, LANES), lambda s, k: (s * kt + k, 0)),
                    pl.BlockSpec((tile_rows, LANES), lambda s, k: (s * kt + k, 0)),
                ],
                out_specs=pl.BlockSpec((1, 3, 8, LANES), lambda s, k: (s, 0, 0, 0)),
                scratch_shapes=[pltpu.VMEM((8, LANES), jnp.float32)] * 3,
            ),
            compiler_params=pltpu.CompilerParams(
                dimension_semantics=("parallel", "arbitrary"),
                vmem_limit_bytes=32 * 1024 * 1024),
            cost_estimate=pl.CostEstimate(
                flops=10 * main_rows * LANES,
                transcendentals=0,
                bytes_accessed=main_rows * LANES * itemsize),
        )(thr, p2, t2)

        sums = partials.sum(axis=(0, 2, 3))     # tiny XLA reduce of (splits,3,8,128)

        if main_rows * LANES != n:
            # Row tail (< splits * tile_rows rows): small XLA pass, no big copy.
            sums = sums + _xla_partial_sums(flat_p[main_rows * LANES:],
                                            flat_t[main_rows * LANES:], thr[0])

    inv_n = jnp.float32(1.0 / n)
    return {
        "main_loss": sums[0] * inv_n,
        "mape": sums[1] * inv_n,
        "tube": sums[2] * inv_n,
    }


def _reference(pred, target, loss_tube):
    diff = pred - target
    absd = jnp.abs(diff)
    huber = jnp.where(absd < DELTA, 0.5 * diff * diff, DELTA * (absd - 0.5 * DELTA))
    mape = jnp.abs(target - pred) / jnp.maximum(target, 1e-7)
    thr = 0.01 * jnp.asarray(loss_tube, jnp.float32)
    return {
        "main_loss": jnp.mean(huber),
        "mape": jnp.mean(mape),
        "tube": jnp.mean((mape < thr).astype(jnp.float32)),
    }


if __name__ == "__main__":
    key = jax.random.PRNGKey(0)
    k1, k2, k3, k4, k5, k6 = jax.random.split(key, 6)

    cases = []

    # NCHW regression-head output: 128-lane aligned, fully covered by the kernel.
    shape = (2, 4, 16, 16)                  # 2048 elements = 16 rows of 128
    cases.append((
        jax.random.uniform(k1, shape, jnp.float32, minval=0.1, maxval=2.0),
        jax.random.uniform(k2, shape, jnp.float32, minval=0.1, maxval=2.0)))

    # 128-aligned but rows (19) not tile-aligned: kernel prefix + small XLA row tail.
    shape2 = (2, 19, 8, 8)                  # 2432 elements = 19 rows of 128
    cases.append((
        jax.random.uniform(k3, shape2, jnp.float32, minval=0.1, maxval=2.0),
        jax.random.uniform(k4, shape2, jnp.float32, minval=0.1, maxval=2.0)))

    # Not a multiple of 128: copy-free XLA fallback path.
    shape3 = (3, 5, 7, 11)                  # 1155 elements
    cases.append((
        jax.random.uniform(k5, shape3, jnp.float32, minval=0.1, maxval=2.0),
        jax.random.uniform(k6, shape3, jnp.float32, minval=0.1, maxval=2.0)))

    for p, t in cases:
        out = adaptive_loss(p, t, LOSS_TUBE)
        out = jax.tree_util.tree_map(jax.block_until_ready, out)
        ref = _reference(p, t, LOSS_TUBE)
        for name in ("main_loss", "mape", "tube"):
            assert jnp.allclose(out[name], ref[name], rtol=1e-5, atol=1e-6), (
                name, p.shape, out[name], ref[name])

    print("KERNEL_OK")
</pallas_src>

<mosaic_0001>
module attributes {stable_mosaic.version = 11 : i64} {
  func.func @_adaptive_loss_kernel(%arg0: i32, %arg1: i32, %arg2: memref<1xf32, #tpu.memory_space<smem>>, %arg3: memref<16x128xf32, #tpu.memory_space<vmem>>, %arg4: memref<16x128xf32, #tpu.memory_space<vmem>>, %arg5: memref<1x3x8x128xf32, #tpu.memory_space<vmem>>, %arg6: memref<8x128xf32, #tpu.memory_space<vmem>>, %arg7: memref<8x128xf32, #tpu.memory_space<vmem>>, %arg8: memref<8x128xf32, #tpu.memory_space<vmem>>) attributes {dimension_semantics = [#tpu.dimension_semantics<parallel>, #tpu.dimension_semantics<arbitrary>], iteration_bounds = array<i64: 1, 1>, scalar_prefetch = 0 : i64, scratch_operands = 3 : i64, tpu.core_type = #tpu.core_type<tc>, window_params = [{transform_indices = @transform_0, window_bounds = array<i64: 1>}, {transform_indices = @transform_1, window_bounds = array<i64: 16, 128>}, {transform_indices = @transform_2, window_bounds = array<i64: 16, 128>}, {transform_indices = @transform_3, window_bounds = array<i64: 1, 3, 8, 128>}]} {
    %c0_i32 = arith.constant 0 : i32
    %0 = arith.cmpi eq, %arg1, %c0_i32 : i32
    %1 = arith.extui %0 : i1 to i32
    %c0_i32_0 = arith.constant 0 : i32
    %2 = arith.cmpi ne, %1, %c0_i32_0 : i32
    scf.if %2 {
      %cst_26 = arith.constant 0.000000e+00 : f32
      %43 = vector.broadcast %cst_26 : f32 to vector<8x128xf32>
      %c0_27 = arith.constant 0 : index
      %c0_28 = arith.constant 0 : index
      %44 = vector.load %arg6[%c0_27, %c0_28] : memref<8x128xf32, #tpu.memory_space<vmem>>, vector<8x128xf32>
      tpu.vector_store %arg6[%c0_27, %c0_28], %43 {strides = array<i32>} : memref<8x128xf32, #tpu.memory_space<vmem>>, vector<8x128xf32>,
      %cst_29 = arith.constant 0.000000e+00 : f32
      %45 = vector.broadcast %cst_29 : f32 to vector<8x128xf32>
      %c0_30 = arith.constant 0 : index
      %c0_31 = arith.constant 0 : index
      %46 = vector.load %arg7[%c0_30, %c0_31] : memref<8x128xf32, #tpu.memory_space<vmem>>, vector<8x128xf32>
      tpu.vector_store %arg7[%c0_30, %c0_31], %45 {strides = array<i32>} : memref<8x128xf32, #tpu.memory_space<vmem>>, vector<8x128xf32>,
      %cst_32 = arith.constant 0.000000e+00 : f32
      %47 = vector.broadcast %cst_32 : f32 to vector<8x128xf32>
      %c0_33 = arith.constant 0 : index
      %c0_34 = arith.constant 0 : index
      %48 = vector.load %arg8[%c0_33, %c0_34] : memref<8x128xf32, #tpu.memory_space<vmem>>, vector<8x128xf32>
      tpu.vector_store %arg8[%c0_33, %c0_34], %47 {strides = array<i32>} : memref<8x128xf32, #tpu.memory_space<vmem>>, vector<8x128xf32>,
    } else {
    }
    %c0 = arith.constant 0 : index
    %c0_1 = arith.constant 0 : index
    %3 = vector.load %arg3[%c0, %c0_1] : memref<16x128xf32, #tpu.memory_space<vmem>>, vector<16x128xf32>
    %c0_2 = arith.constant 0 : index
    %c0_3 = arith.constant 0 : index
    %4 = vector.load %arg4[%c0_2, %c0_3] : memref<16x128xf32, #tpu.memory_space<vmem>>, vector<16x128xf32>
    %c0_4 = arith.constant 0 : index
    %5 = memref.load %arg2[%c0_4] : memref<1xf32, #tpu.memory_space<smem>>
    %6 = arith.subf %3, %4 : vector<16x128xf32>
    %7 = math.absf %6 : vector<16x128xf32>
    %cst = arith.constant 0.00999999977 : f32
    %8 = vector.broadcast %cst : f32 to vector<16x128xf32>
    %9 = arith.cmpf olt, %7, %8 : vector<16x128xf32>
    %cst_5 = arith.constant 5.000000e-01 : f32
    %10 = vector.broadcast %cst_5 : f32 to vector<16x128xf32>
    %11 = arith.mulf %10, %6 : vector<16x128xf32>
    %12 = arith.mulf %11, %6 : vector<16x128xf32>
    %cst_6 = arith.constant 5.000000e-03 : f32
    %13 = vector.broadcast %cst_6 : f32 to vector<16x128xf32>
    %14 = arith.subf %7, %13 : vector<16x128xf32>
    %cst_7 = arith.constant 0.00999999977 : f32
    %15 = vector.broadcast %cst_7 : f32 to vector<16x128xf32>
    %16 = arith.mulf %15, %14 : vector<16x128xf32>
    %17 = arith.select %9, %12, %16 : vector<16x128xi1>, vector<16x128xf32>
    %cst_8 = arith.constant 1.000000e-07 : f32
    %18 = vector.broadcast %cst_8 : f32 to vector<16x128xf32>
    %19 = arith.maximumf %4, %18 : vector<16x128xf32>
    %20 = arith.divf %7, %19 : vector<16x128xf32>
    %21 = vector.broadcast %5 : f32 to vector<16x128xf32>
    %22 = arith.cmpf olt, %20, %21 : vector<16x128xf32>
    %23 = arith.extui %22 : vector<16x128xi1> to vector<16x128xi32>
    %24 = arith.sitofp %23 : vector<16x128xi32> to vector<16x128xf32>
    %c0_9 = arith.constant 0 : index
    %c0_10 = arith.constant 0 : index
    %25 = vector.load %arg6[%c0_9, %c0_10] : memref<8x128xf32, #tpu.memory_space<vmem>>, vector<8x128xf32>
    %26 = vector.shape_cast %17 : vector<16x128xf32> to vector<2x8x128xf32>
    %cst_11 = arith.constant dense<0.000000e+00> : vector<8x128xf32>
    %27 = vector.multi_reduction <add>, %26, %cst_11 [0] : vector<2x8x128xf32> to vector<8x128xf32>
    %28 = arith.addf %25, %27 : vector<8x128xf32>
    %c0_12 = arith.constant 0 : index
    %c0_13 = arith.constant 0 : index
    %29 = vector.load %arg6[%c0_12, %c0_13] : memref<8x128xf32, #tpu.memory_space<vmem>>, vector<8x128xf32>
    tpu.vector_store %arg6[%c0_12, %c0_13], %28 {strides = array<i32>} : memref<8x128xf32, #tpu.memory_space<vmem>>, vector<8x128xf32>,
    %c0_14 = arith.constant 0 : index
    %c0_15 = arith.constant 0 : index
    %30 = vector.load %arg7[%c0_14, %c0_15] : memref<8x128xf32, #tpu.memory_space<vmem>>, vector<8x128xf32>
    %31 = vector.shape_cast %20 : vector<16x128xf32> to vector<2x8x128xf32>
    %cst_16 = arith.constant dense<0.000000e+00> : vector<8x128xf32>
    %32 = vector.multi_reduction <add>, %31, %cst_16 [0] : vector<2x8x128xf32> to vector<8x128xf32>
    %33 = arith.addf %30, %32 : vector<8x128xf32>
    %c0_17 = arith.constant 0 : index
    %c0_18 = arith.constant 0 : index
    %34 = vector.load %arg7[%c0_17, %c0_18] : memref<8x128xf32, #tpu.memory_space<vmem>>, vector<8x128xf32>
    tpu.vector_store %arg7[%c0_17, %c0_18], %33 {strides = array<i32>} : memref<8x128xf32, #tpu.memory_space<vmem>>, vector<8x128xf32>,
    %c0_19 = arith.constant 0 : index
    %c0_20 = arith.constant 0 : index
    %35 = vector.load %arg8[%c0_19, %c0_20] : memref<8x128xf32, #tpu.memory_space<vmem>>, vector<8x128xf32>
    %36 = vector.shape_cast %24 : vector<16x128xf32> to vector<2x8x128xf32>
    %cst_21 = arith.constant dense<0.000000e+00> : vector<8x128xf32>
    %37 = vector.multi_reduction <add>, %36, %cst_21 [0] : vector<2x8x128xf32> to vector<8x128xf32>
    %38 = arith.addf %35, %37 : vector<8x128xf32>
    %c0_22 = arith.constant 0 : index
    %c0_23 = arith.constant 0 : index
    %39 = vector.load %arg8[%c0_22, %c0_23] : memref<8x128xf32, #tpu.memory_space<vmem>>, vector<8x128xf32>
    tpu.vector_store %arg8[%c0_22, %c0_23], %38 {strides = array<i32>} : memref<8x128xf32, #tpu.memory_space<vmem>>, vector<8x128xf32>,
    %c0_i32_24 = arith.constant 0 : i32
    %40 = arith.cmpi eq, %arg1, %c0_i32_24 : i32
    %41 = arith.extui %40 : i1 to i32
    %c0_i32_25 = arith.constant 0 : i32
    %42 = arith.cmpi ne, %41, %c0_i32_25 : i32
    scf.if %42 {
      %c0_26 = arith.constant 0 : index
      %c0_27 = arith.constant 0 : index
      %43 = vector.load %arg6[%c0_26, %c0_27] : memref<8x128xf32, #tpu.memory_space<vmem>>, vector<8x128xf32>
      %c0_28 = arith.constant 0 : index
      %c0_29 = arith.constant 0 : index
      %c0_30 = arith.constant 0 : index
      %c0_31 = arith.constant 0 : index
      %44 = vector.load %arg5[%c0_28, %c0_29, %c0_30, %c0_31] : memref<1x3x8x128xf32, #tpu.memory_space<vmem>>, vector<1x1x8x128xf32>
      %45 = vector.shape_cast %44 : vector<1x1x8x128xf32> to vector<8x128xf32>
      %46 = vector.shape_cast %43 : vector<8x128xf32> to vector<1x1x8x128xf32>
      tpu.vector_store %arg5[%c0_28, %c0_29, %c0_30, %c0_31], %46 {strides = array<i32>} : memref<1x3x8x128xf32, #tpu.memory_space<vmem>>, vector<1x1x8x128xf32>,
      %c0_32 = arith.constant 0 : index
      %c0_33 = arith.constant 0 : index
      %47 = vector.load %arg7[%c0_32, %c0_33] : memref<8x128xf32, #tpu.memory_space<vmem>>, vector<8x128xf32>
      %c0_34 = arith.constant 0 : index
      %c1 = arith.constant 1 : index
      %c0_35 = arith.constant 0 : index
      %c0_36 = arith.constant 0 : index
      %48 = vector.load %arg5[%c0_34, %c1, %c0_35, %c0_36] : memref<1x3x8x128xf32, #tpu.memory_space<vmem>>, vector<1x1x8x128xf32>
      %49 = vector.shape_cast %48 : vector<1x1x8x128xf32> to vector<8x128xf32>
      %50 = vector.shape_cast %47 : vector<8x128xf32> to vector<1x1x8x128xf32>
      tpu.vector_store %arg5[%c0_34, %c1, %c0_35, %c0_36], %50 {strides = array<i32>} : memref<1x3x8x128xf32, #tpu.memory_space<vmem>>, vector<1x1x8x128xf32>,
      %c0_37 = arith.constant 0 : index
      %c0_38 = arith.constant 0 : index
      %51 = vector.load %arg8[%c0_37, %c0_38] : memref<8x128xf32, #tpu.memory_space<vmem>>, vector<8x128xf32>
      %c0_39 = arith.constant 0 : index
      %c2 = arith.constant 2 : index
      %c0_40 = arith.constant 0 : index
      %c0_41 = arith.constant 0 : index
      %52 = vector.load %arg5[%c0_39, %c2, %c0_40, %c0_41] : memref<1x3x8x128xf32, #tpu.memory_space<vmem>>, vector<1x1x8x128xf32>
      %53 = vector.shape_cast %52 : vector<1x1x8x128xf32> to vector<8x128xf32>
      %54 = vector.shape_cast %51 : vector<8x128xf32> to vector<1x1x8x128xf32>
      tpu.vector_store %arg5[%c0_39, %c2, %c0_40, %c0_41], %54 {strides = array<i32>} : memref<1x3x8x128xf32, #tpu.memory_space<vmem>>, vector<1x1x8x128xf32>,
    } else {
    }
    return
  }
  func.func @transform_0(%arg0: i32, %arg1: i32) -> i32 {
    %c0_i32 = arith.constant 0 : i32
    %c0_i32_0 = arith.constant 0 : i32
    return %c0_i32 : i32
  }
  func.func @transform_1(%arg0: i32, %arg1: i32) -> (i32, i32) {
    %c1_i32 = arith.constant 1 : i32
    %0 = arith.muli %arg0, %c1_i32 : i32
    %1 = arith.addi %0, %arg1 : i32
    %c0_i32 = arith.constant 0 : i32
    %c0_i32_0 = arith.constant 0 : i32
    return %1, %c0_i32 : i32, i32
  }
  func.func @transform_2(%arg0: i32, %arg1: i32) -> (i32, i32) {
    %c1_i32 = arith.constant 1 : i32
    %0 = arith.muli %arg0, %c1_i32 : i32
    %1 = arith.addi %0, %arg1 : i32
    %c0_i32 = arith.constant 0 : i32
    %c0_i32_0 = arith.constant 0 : i32
    return %1, %c0_i32 : i32, i32
  }
  func.func @transform_3(%arg0: i32, %arg1: i32) -> (i32, i32, i32, i32) {
    %c0_i32 = arith.constant 0 : i32
    %c0_i32_0 = arith.constant 0 : i32
    %c0_i32_1 = arith.constant 0 : i32
    %c0_i32_2 = arith.constant 0 : i32
    return %arg0, %c0_i32, %c0_i32_0, %c0_i32_1 : i32, i32, i32, i32
  }
}

</mosaic_0001>

<llo_original>
// kernel: adaptive_loss.1
$region0: #{adaptive_loss.1}
  #allocation0 [shape = 'u32[]', space=smem, size = 0x4, offset = 0x4, fixed_abs, tag = 'smem constant byte address 0x4 - core index']
  #allocation1 [shape = 'u32[144,128]{1,0:T(1,128)}', space=vmem, size = 0x12000, scoped, tag = 'internal scratch']
  #allocation2 [shape = 'f32[8,128]{1,0:T(8,128)}', space=vmem, size = 0x1000, scoped, tag = 'scratch operand']
  #allocation3 [shape = 'f32[8,128]{1,0:T(8,128)}', space=vmem, size = 0x1000, scoped, tag = 'scratch operand']
  #allocation4 [shape = 'f32[8,128]{1,0:T(8,128)}', space=vmem, size = 0x1000, scoped, tag = 'scratch operand']
  #allocation5 [shape = 'f32[1]{0:T(128)S(6)}', space=smem, size = 0x200, scoped, tag = 'scoped memory for adaptive_loss.1']
  %s0 = inlined_call_operand.<no memory space> [shape: f32[1], index: 0, kind: input, shape index: {}]
  %s1 = inlined_call_operand.vmem [shape: f32[16,128], index: 1, kind: input, shape index: {}]
  %s2 = inlined_call_operand.vmem [shape: f32[16,128], index: 2, kind: input, shape index: {}]
  %s3 = inlined_call_operand.vmem [shape: f32[1,3,8,128], index: 3, kind: output, shape index: {}]
  %s4 = sld [smem:[#allocation0]]
  $region30: #{adaptive_loss.1} parent=0
    _
  %s6 = ssub.s32 1, %s4
  %s7 = scalar_select 0, %s6, %s4
  %8 = sst [smem:[#allocation5]] %s0
  // Predicated region
  $region2: #{adaptive_loss.1} parent=0 // pred_check
    _
  $region3: #{adaptive_loss.1} parent=0 // pred_check_branch
    %10 = sbr.rel (0) target = $region5
  $region4: #{adaptive_loss.1} parent=0 // pred_region
    _
  $region5: #{adaptive_loss.1} parent=0 // pred_fallthru
    _
  // Predicated region
  $region6: #{adaptive_loss.1} parent=0 // pred_check
    _
  $region7: #{adaptive_loss.1} parent=0 // pred_check_branch
    %12 = sbr.rel (0) target = $region9
  $region8: #{adaptive_loss.1} parent=0 // pred_region
    %s13 = sadd.s32 0, 0
    %s14 = smul.u32 2, %s13
    %p15 = scmp.lt.s32.totalorder %s14, 1
    %s16 = scalar_select %p15, %s14, 1
    %s17 = smul.addr %s16, 8
    %s18 = scalar_lea.vmem %s1, %s17
    %s19 = sadd.s32 0, 0
    %s20 = smul.u32 2, %s19
  $region9: #{adaptive_loss.1} parent=0 // pred_fallthru
    _
  // Predicated region
  $region10: #{adaptive_loss.1} parent=0 // pred_check
    _
  $region11: #{adaptive_loss.1} parent=0 // pred_check_branch
    %22 = sbr.rel (0) target = $region13
  $region12: #{adaptive_loss.1} parent=0 // pred_region
    %s23 = sadd.s32 0, 0
    %s24 = smul.u32 2, %s23
    %p25 = scmp.lt.s32.totalorder %s24, 1
    %s26 = scalar_select %p25, %s24, 1
    %s27 = smul.addr %s26, 8
    %s28 = scalar_lea.vmem %s2, %s27
    %s29 = sadd.s32 0, 0
    %s30 = smul.u32 2, %s29
  $region13: #{adaptive_loss.1} parent=0 // pred_fallthru
    _
  %s31 = sadd.s32 0, 0
  %s32 = smul.u32 2, %s31
  %p33 = scmp.lt.s32.totalorder %s32, 1
  %s34 = scalar_select %p33, %s32, 1
  %s35 = smul.addr %s34, 8
  %s36 = scalar_lea.vmem %s1, %s35
  %s37 = sadd.s32 0, 0
  %s38 = smul.u32 2, %s37
  %p39 = scmp.lt.s32.totalorder %s38, 1
  %s40 = scalar_select %p39, %s38, 1
  %s41 = smul.addr %s40, 8
  %s42 = scalar_lea.vmem %s2, %s41
  %s43 = sadd.s32 0, 0
  %s44 = smul.u32 2, %s43
  %p45 = scmp.lt.s32.totalorder %s44, 1
  %s46 = scalar_select %p45, %s44, 1
  %s47 = smul.addr %s46, 8
  %s48 = scalar_lea.vmem %s1, %s47
  %s49 = sadd.s32 0, 0
  %s50 = smul.u32 2, %s49
  %s51 = sadd.s32 0, 0
  %s52 = smul.u32 2, %s51
  %p53 = scmp.lt.s32.totalorder %s52, 1
  %s54 = scalar_select %p53, %s52, 1
  %s55 = smul.addr %s54, 8
  %s56 = scalar_lea.vmem %s2, %s55
  %s57 = sadd.s32 0, 0
  %s58 = smul.u32 2, %s57
  %p59 = scmp.eq.s32.totalorder 0, 0
  // Predicated region
  $region14: #{adaptive_loss.1} parent=0 // pred_check
    %p60 = pneg %p59
  $region15: #{adaptive_loss.1} parent=0 // pred_check_branch
    %62 = sbr.rel (%p60) target = $region17
  $region16: #{adaptive_loss.1} parent=0 // pred_region
    %63 = vst [vmem:[#allocation2] sm:$0xff] 0.0
    %64 = vst [vmem:[#allocation3] sm:$0xff] 0.0
    %65 = vst [vmem:[#allocation4] sm:$0xff] 0.0
  $region17: #{adaptive_loss.1} parent=0 // pred_fallthru
    _
  %v66 = vld [vmem:[%s48] sm:$0xff]
  %v67 = vld [vmem:[%s48 + $0x8] sm:$0xff]
  %v68 = vld [vmem:[%s56] sm:$0xff]
  %v69 = vld [vmem:[%s56 + $0x8] sm:$0xff]
  %s70 = sld [smem:[#allocation5]]
  %v71 = vsub.f32 %v66, %v68
  %v72 = vsub.f32 %v67, %v69
  %v73 = vand.u32 2147483647, %v71
  %v74 = vand.u32 2147483647, %v72
  %vm75 = vcmp.lt.f32.partialorder %v73, 0.01
  %vm76 = vcmp.lt.f32.partialorder %v74, 0.01
  %v77 = vmul.f32 %v71, 0.5
  %v78 = vmul.f32 %v72, 0.5
  %v79 = vmul.f32 %v77, %v71
  %v80 = vmul.f32 %v78, %v72
  %v81 = vsub.f32 %v73, 0.005
  %v82 = vsub.f32 %v74, 0.005
  %v83 = vmul.f32 %v81, 0.01
  %v84 = vmul.f32 %v82, 0.01
  %v85 = vsel %vm75, %v79, %v83
  %v86 = vsel %vm76, %v80, %v84
  %v87 = vmax.f32 %v68, 1e-07
  %v88 = vmax.f32 %v69, 1e-07
  %v89 = vrcp.pop %v87
  %v90 = vmul.f32 %v73, %v89
  %v91 = vrcp.pop %v88
  %v92 = vmul.f32 %v74, %v91
  %v93 = vstv %s70
  %vm94 = vcmp.lt.f32.partialorder %v90, %v93
  %vm95 = vcmp.lt.f32.partialorder %v92, %v93
  %v96 = vsel %vm94, 1, 0
  %v97 = vsel %vm95, 1, 0
  %v98 = vcvt.s32.f32 %v96
  %v99 = vcvt.s32.f32 %v97
  %v100 = vld [vmem:[#allocation2] sm:$0xff]
  %v101 = vadd.f32 %v85, %v86
  %v102 = vadd.f32 %v100, %v101
  %103 = vst [vmem:[#allocation2] sm:$0xff] %v102
  %v104 = vld [vmem:[#allocation3] sm:$0xff]
  %v105 = vadd.f32 %v90, %v92
  %v106 = vadd.f32 %v104, %v105
  %107 = vst [vmem:[#allocation3] sm:$0xff] %v106
  %v108 = vld [vmem:[#allocation4] sm:$0xff]
  %v109 = vadd.f32 %v98, %v99
  %v110 = vadd.f32 %v108, %v109
  %111 = vst [vmem:[#allocation4] sm:$0xff] %v110
  // Predicated region
  $region18: #{adaptive_loss.1} parent=0 // pred_check
    %p112 = pneg %p59
  $region19: #{adaptive_loss.1} parent=0 // pred_check_branch
    %114 = sbr.rel (%p112) target = $region21
  $region20: #{adaptive_loss.1} parent=0 // pred_region
    %v115 = vld [vmem:[#allocation2] sm:$0xff]
    %116 = vst [vmem:[%s3] sm:$0xff] %v115
    %v117 = vld [vmem:[#allocation3] sm:$0xff]
    %s118 = scalar_lea.vmem %s3, 8
    %119 = vst [vmem:[%s118] sm:$0xff] %v117
    %v120 = vld [vmem:[#allocation4] sm:$0xff]
    %s121 = scalar_lea.vmem %s3, 16
    %122 = vst [vmem:[%s121] sm:$0xff] %v120
  $region21: #{adaptive_loss.1} parent=0 // pred_fallthru
    _
  // Predicated region
  $region22: #{adaptive_loss.1} parent=0 // pred_check
    _
  $region23: #{adaptive_loss.1} parent=0 // pred_check_branch
    %124 = sbr.rel (0) target = $region25
  $region24: #{adaptive_loss.1} parent=0 // pred_region
    _
  $region25: #{adaptive_loss.1} parent=0 // pred_fallthru
    _
  // Predicated region
  $region26: #{adaptive_loss.1} parent=0 // pred_check
    _
  $region27: #{adaptive_loss.1} parent=0 // pred_check_branch
    %126 = sbr.rel (0) target = $region29
  $region28: #{adaptive_loss.1} parent=0 // pred_region
    _
  $region29: #{adaptive_loss.1} parent=0 // pred_fallthru
    _

</llo_original>
